<compile_context>
chip_gen: v7x
topology: tpu7x:2x2x1
jax: 0.10.0
libtpu: 0.0.40
codegen_flags: <defaults>
</compile_context>

<pallas_src>
import functools

import jax
import jax.numpy as jnp
from jax import lax
from jax.experimental import pallas as pl
from jax.experimental.pallas import tpu as pltpu


_HALO = 8  # sublane-aligned halo rows fetched on each side of a time tile


def _round_up(v, m):
    return (v + m - 1) // m * m


# --------------------------------------------------------------------------
# Conv1d hot path
# --------------------------------------------------------------------------
def _conv1d_kernel(xl_ref, xc_ref, xr_ref, w_ref, o_ref, ext_ref, *,
                   tile_t, pad, k_taps, t_in):
    """One (batch, time-tile) grid step of the stride-1 Conv1d.

    xl_ref : (1, _HALO, C_in)      bf16 rows just before this tile
    xc_ref : (1, tile_t, C_in)     bf16 body rows of this tile
    xr_ref : (1, _HALO, C_in)      bf16 rows just after this tile
    w_ref  : (K, C_in, C_out_pad)  bf16 full conv weight (resident)
    o_ref  : (1, tile_t, C_out_pad)
    ext_ref: (tile_t+16, C_in)     bf16 scratch: extended slab
    """
    i = pl.program_id(1)
    ext_rows = tile_t + 2 * _HALO
    base = i * tile_t - _HALO          # intended global index of ext row 0

    # Assemble the bf16 extended slab once (all offsets sublane-aligned).
    ext_ref[0:_HALO, :] = xl_ref[0]
    ext_ref[_HALO:_HALO + tile_t, :] = xc_ref[0]
    ext_ref[_HALO + tile_t:ext_rows, :] = xr_ref[0]

    # Edge-only zero masking; interior tiles skip both branches entirely.
    @pl.when(i == 0)
    def _():
        # Left halo of the first tile: every intended global index is < 0.
        ext_ref[0:_HALO, :] = jnp.zeros((_HALO, ext_ref.shape[1]),
                                        ext_ref.dtype)

    @pl.when(base + ext_rows > t_in)
    def _():
        # Ragged tail / right halo past the end of the sequence (also
        # neutralizes clamped halo blocks and partial-boundary garbage).
        g = base + lax.broadcasted_iota(jnp.int32, (ext_rows, 1), 0)
        v = ext_ref[...]
        ext_ref[...] = jnp.where(g < t_in, v, jnp.zeros_like(v))

    ext = ext_ref[...]                  # (ext_rows, C_in) bf16

    # K taps: bf16 MXU matmuls over the whole slab; the misaligned shift is
    # applied to the narrow f32 output (roll on C_out_pad lanes, XLU slot),
    # partial sums chained as values (no VMEM accumulator round trips).
    acc = None
    for k in range(k_taps):
        off = _HALO - pad + k           # >= 0 by construction
        z = jnp.dot(ext, w_ref[k], preferred_element_type=jnp.float32)
        if off % 8 == 0:                # sublane-aligned: plain prefix slice
            zk = z[off:off + tile_t, :]
        else:                           # XLU rotate + aligned prefix
            zk = pltpu.roll(z, shift=ext_rows - off, axis=0)[:tile_t, :]
        acc = zk if acc is None else acc + zk

    o_ref[0] = acc.astype(o_ref.dtype)


def conv1d_proj(x, w_torch, *, kernel, stride=1, tile_t=None):
    """Channels-last equivalent of
    nn.Conv1d(C_in, C_out, kernel, stride=stride, padding=kernel // 2,
              bias=False) applied to x of shape (B, T, C_in).

    w_torch uses the PyTorch Conv1d layout (C_out, C_in, K).
    Returns (B, T_out, C_out) in x's original dtype.  Inputs/weights are
    consumed at bf16 precision with f32 accumulation.
    """
    b, t, c_in = x.shape
    c_out, c_in_w, k = w_torch.shape
    assert c_in_w == c_in and k == kernel
    pad = kernel // 2
    t_out1 = t + 2 * pad - kernel + 1            # stride-1 output length
    assert t_out1 >= 1
    assert pad <= _HALO and (kernel - pad) <= _HALO

    out_dtype = x.dtype
    if x.dtype != jnp.bfloat16:
        # Under jit this convert fuses with the producer of x; callers can
        # also pass bf16 directly to avoid the extra pass.
        x = x.astype(jnp.bfloat16)

    c_out_pad = _round_up(c_out, 128)            # lane-dense output / MXU N
    if tile_t is None:
        tile_t = min(1024, _round_up(t_out1, 8))
    tile_t = max(8, _round_up(tile_t, 8))
    n_t = pl.cdiv(t_out1, tile_t)
    t_out_alloc = n_t * tile_t                   # sublane-aligned output rows
    ext_rows = tile_t + 2 * _HALO

    # (C_out, C_in, K) -> (K, C_in, C_out_pad) bf16 (tiny array).
    w = jnp.transpose(w_torch, (2, 1, 0))
    w = jnp.pad(w, ((0, 0), (0, 0), (0, c_out_pad - c_out)))
    w = w.astype(jnp.bfloat16)

    blk8 = tile_t // 8
    last_blk8 = max(pl.cdiv(t, 8) - 1, 0)        # last valid 8-row block of T
    last_blk_t = max((t - 1) // tile_t, 0)       # last tile_t block touching T

    kern = functools.partial(_conv1d_kernel, tile_t=tile_t, pad=pad,
                             k_taps=kernel, t_in=t)

    y = pl.pallas_call(
        kern,
        out_shape=jax.ShapeDtypeStruct((b, t_out_alloc, c_out_pad), out_dtype),
        grid_spec=pltpu.PrefetchScalarGridSpec(
            num_scalar_prefetch=0,
            grid=(b, n_t),
            in_specs=[
                # left halo: 8 rows just before the tile (clamped at i == 0;
                # clamped rows are masked in-kernel).
                pl.BlockSpec(
                    (1, _HALO, c_in),
                    lambda bi, ti: (bi, jnp.maximum(ti * blk8 - 1, 0), 0)),
                # body tile (clamped at the ragged end; masked in-kernel).
                pl.BlockSpec(
                    (1, tile_t, c_in),
                    lambda bi, ti: (bi, jnp.minimum(ti, last_blk_t), 0)),
                # right halo: 8 rows just after the tile (clamped at the end).
                pl.BlockSpec(
                    (1, _HALO, c_in),
                    lambda bi, ti: (bi, jnp.minimum((ti + 1) * blk8, last_blk8), 0)),
                # full conv weight, resident across all grid steps.
                pl.BlockSpec((kernel, c_in, c_out_pad),
                             lambda bi, ti: (0, 0, 0)),
            ],
            out_specs=pl.BlockSpec((1, tile_t, c_out_pad),
                                   lambda bi, ti: (bi, ti, 0)),
            scratch_shapes=[pltpu.VMEM((ext_rows, c_in), jnp.bfloat16)],
        ),
        compiler_params=pltpu.CompilerParams(
            dimension_semantics=("parallel", "parallel"),
        ),
    )(x, x, x, w)

    # Un-pad (lane / time padding) and apply stride: a strided Conv1d equals
    # the stride-1 conv subsampled by `stride`.
    # TODO(synk): for stride > 1 this wastes a factor `stride` of MXU work and
    # the crop is an extra XLA copy; wav2vec-U's default generator_stride is 1
    # and downstream consumers could accept the padded layout directly.
    if stride == 1 and t_out1 == t_out_alloc and c_out == c_out_pad:
        return y
    return y[:, :t_out1:stride, :c_out]


# --------------------------------------------------------------------------
# Generator forward
# --------------------------------------------------------------------------
def generator_forward(dense_x, tokens, dense_padding_mask, params, cfg):
    kernel = cfg["generator_kernel"]
    stride = cfg["generator_stride"]

    # TODO(synk): Dropout(p=generator_dropout) treated as identity (eval mode).
    dense_x = conv1d_proj(dense_x, params["conv_weight"], kernel=kernel,
                          stride=stride, tile_t=cfg.get("tile_t"))

    if stride > 1:
        dense_padding_mask = dense_padding_mask[:, ::stride]

    if dense_padding_mask.shape[1] != dense_x.shape[1]:
        diff = dense_x.shape[1] - dense_padding_mask.shape[1]
        assert diff > 0, (dense_x.shape, dense_padding_mask.shape)
        new_padding = jnp.zeros(dense_x.shape[:-1],
                                dtype=dense_padding_mask.dtype)
        new_padding = new_padding.at[:, diff:].set(dense_padding_mask)
        dense_padding_mask = new_padding

    token_x = None
    if tokens is not None:
        # `scatter_(1, tokens.view(-1, 1), 1)` is a plain one-hot; a Pallas
        # kernel only adds launch overhead at this size (per perf review).
        token_x = jax.nn.one_hot(tokens, params["output_dim"],
                                 dtype=dense_x.dtype)

    return {
        "dense_x": dense_x,
        "token_x": token_x,
        "dense_padding_mask": dense_padding_mask,
    }


# --------------------------------------------------------------------------
# main
# --------------------------------------------------------------------------
if __name__ == "__main__":
    B, T = 2, 8
    INPUT_DIM, OUTPUT_DIM = 32, 32
    cfg = {"generator_kernel": 4, "generator_stride": 1}
    K = cfg["generator_kernel"]

    key = jax.random.PRNGKey(0)
    k_x, k_w, k_tok = jax.random.split(key, 3)

    dense_x = jax.random.normal(k_x, (B, T, INPUT_DIM), dtype=jnp.float32)
    tokens = jax.random.randint(k_tok, (B, T), 0, OUTPUT_DIM, dtype=jnp.int32)
    dense_padding_mask = jnp.zeros((B, T), dtype=jnp.bool_).at[:, T - 2:].set(True)

    # Conv1d weight in the PyTorch layout (C_out, C_in, K), bias=False.
    bound = 1.0 / (INPUT_DIM * K) ** 0.5
    conv_weight = jax.random.uniform(
        k_w, (OUTPUT_DIM, INPUT_DIM, K), jnp.float32, -bound, bound)

    params = {"conv_weight": conv_weight, "output_dim": OUTPUT_DIM}

    result = generator_forward(dense_x, tokens, dense_padding_mask, params, cfg)
    jax.block_until_ready(result)

    # Reference conv over bf16-quantized inputs (kernel uses bf16 MXU inputs
    # with f32 accumulation).
    def ref_conv(x, w_torch, stride):
        w_wio = jnp.transpose(w_torch, (2, 1, 0))           # (K, C_in, C_out)
        xq = x.astype(jnp.bfloat16).astype(jnp.float32)
        wq = w_wio.astype(jnp.bfloat16).astype(jnp.float32)
        return lax.conv_general_dilated(
            xq, wq, window_strides=(stride,), padding=[(K // 2, K // 2)],
            dimension_numbers=("NWC", "WIO", "NWC"))

    ref = ref_conv(dense_x, conv_weight, 1)
    assert result["dense_x"].shape == (B, T + 1, OUTPUT_DIM)
    assert result["token_x"].shape == (B, T, OUTPUT_DIM)
    assert result["dense_padding_mask"].shape == (B, T + 1)
    assert jnp.allclose(result["dense_x"], ref, atol=2e-3, rtol=2e-3), \
        float(jnp.max(jnp.abs(result["dense_x"] - ref)))

    # Multi-tile path (exercises halos + edge-gated masking) and stride.
    T2 = 40
    x2 = jax.random.normal(jax.random.PRNGKey(1), (B, T2, INPUT_DIM),
                           dtype=jnp.float32)
    y2 = conv1d_proj(x2, conv_weight, kernel=K, stride=1, tile_t=16)
    assert jnp.allclose(y2, ref_conv(x2, conv_weight, 1), atol=2e-3, rtol=2e-3)
    y3 = conv1d_proj(x2, conv_weight, kernel=K, stride=2, tile_t=16)
    assert jnp.allclose(y3, ref_conv(x2, conv_weight, 2), atol=2e-3, rtol=2e-3)

    print("KERNEL_OK")
</pallas_src>

<mosaic_0001>
module attributes {stable_mosaic.version = 11 : i64} {
  func.func @_conv1d_kernel(%arg0: i32, %arg1: i32, %arg2: memref<1x8x32xbf16, #tpu.memory_space<vmem>>, %arg3: memref<1x16x32xbf16, #tpu.memory_space<vmem>>, %arg4: memref<1x8x32xbf16, #tpu.memory_space<vmem>>, %arg5: memref<4x32x128xbf16, #tpu.memory_space<vmem>>, %arg6: memref<1x16x128xf32, #tpu.memory_space<vmem>>, %arg7: memref<32x32xbf16, #tpu.memory_space<vmem>>) attributes {dimension_semantics = [#tpu.dimension_semantics<parallel>, #tpu.dimension_semantics<parallel>], iteration_bounds = array<i64: 2, 1>, scalar_prefetch = 0 : i64, scratch_operands = 1 : i64, tpu.core_type = #tpu.core_type<tc>, window_params = [{transform_indices = @transform_0, window_bounds = array<i64: 1, 8, 32>}, {transform_indices = @transform_1, window_bounds = array<i64: 1, 16, 32>}, {transform_indices = @transform_2, window_bounds = array<i64: 1, 8, 32>}, {pipeline_mode = #tpu.pipeline_mode<synchronous>, transform_indices = @transform_3, window_bounds = array<i64: 4, 32, 128>}, {transform_indices = @transform_4, window_bounds = array<i64: 1, 16, 128>}]} {
    %c16_i32 = arith.constant 16 : i32
    %0 = arith.muli %arg1, %c16_i32 : i32
    %c8_i32 = arith.constant 8 : i32
    %1 = arith.subi %0, %c8_i32 : i32
    %c0 = arith.constant 0 : index
    %c0_0 = arith.constant 0 : index
    %c0_1 = arith.constant 0 : index
    %2 = vector.load %arg2[%c0, %c0_0, %c0_1] : memref<1x8x32xbf16, #tpu.memory_space<vmem>>, vector<1x8x32xbf16>
    %3 = vector.shape_cast %2 : vector<1x8x32xbf16> to vector<8x32xbf16>
    %c0_2 = arith.constant 0 : index
    %c0_3 = arith.constant 0 : index
    %4 = vector.load %arg7[%c0_2, %c0_3] : memref<32x32xbf16, #tpu.memory_space<vmem>>, vector<8x32xbf16>
    tpu.vector_store %arg7[%c0_2, %c0_3], %3 {strides = array<i32>} : memref<32x32xbf16, #tpu.memory_space<vmem>>, vector<8x32xbf16>,
    %c0_4 = arith.constant 0 : index
    %c0_5 = arith.constant 0 : index
    %c0_6 = arith.constant 0 : index
    %5 = vector.load %arg3[%c0_4, %c0_5, %c0_6] : memref<1x16x32xbf16, #tpu.memory_space<vmem>>, vector<1x16x32xbf16>
    %6 = vector.shape_cast %5 : vector<1x16x32xbf16> to vector<16x32xbf16>
    %c8 = arith.constant 8 : index
    %c0_7 = arith.constant 0 : index
    %7 = vector.load %arg7[%c8, %c0_7] : memref<32x32xbf16, #tpu.memory_space<vmem>>, vector<16x32xbf16>
    tpu.vector_store %arg7[%c8, %c0_7], %6 {strides = array<i32>} : memref<32x32xbf16, #tpu.memory_space<vmem>>, vector<16x32xbf16>,
    %c0_8 = arith.constant 0 : index
    %c0_9 = arith.constant 0 : index
    %c0_10 = arith.constant 0 : index
    %8 = vector.load %arg4[%c0_8, %c0_9, %c0_10] : memref<1x8x32xbf16, #tpu.memory_space<vmem>>, vector<1x8x32xbf16>
    %9 = vector.shape_cast %8 : vector<1x8x32xbf16> to vector<8x32xbf16>
    %c24 = arith.constant 24 : index
    %c0_11 = arith.constant 0 : index
    %10 = vector.load %arg7[%c24, %c0_11] : memref<32x32xbf16, #tpu.memory_space<vmem>>, vector<8x32xbf16>
    tpu.vector_store %arg7[%c24, %c0_11], %9 {strides = array<i32>} : memref<32x32xbf16, #tpu.memory_space<vmem>>, vector<8x32xbf16>,
    %c0_i32 = arith.constant 0 : i32
    %11 = arith.cmpi eq, %arg1, %c0_i32 : i32
    %12 = arith.extui %11 : i1 to i32
    %c0_i32_12 = arith.constant 0 : i32
    %13 = arith.cmpi ne, %12, %c0_i32_12 : i32
    scf.if %13 {
      %cst_32 = arith.constant 0.000000e+00 : bf16
      %44 = vector.broadcast %cst_32 : bf16 to vector<8x32xbf16>
      %c0_33 = arith.constant 0 : index
      %c0_34 = arith.constant 0 : index
      %45 = vector.load %arg7[%c0_33, %c0_34] : memref<32x32xbf16, #tpu.memory_space<vmem>>, vector<8x32xbf16>
      tpu.vector_store %arg7[%c0_33, %c0_34], %44 {strides = array<i32>} : memref<32x32xbf16, #tpu.memory_space<vmem>>, vector<8x32xbf16>,
    } else {
    }
    %c32_i32 = arith.constant 32 : i32
    %14 = arith.addi %1, %c32_i32 : i32
    %c8_i32_13 = arith.constant 8 : i32
    %15 = arith.cmpi sgt, %14, %c8_i32_13 : i32
    %16 = arith.extui %15 : i1 to i32
    %c0_i32_14 = arith.constant 0 : i32
    %17 = arith.cmpi ne, %16, %c0_i32_14 : i32
    scf.if %17 {
      %44 = tpu.iota {dimensions = array<i32: 0>} : vector<32x1xi32>
      %45 = vector.broadcast %1 : i32 to vector<32x1xi32>
      %46 = arith.addi %45, %44 : vector<32x1xi32>
      %c0_32 = arith.constant 0 : index
      %c0_33 = arith.constant 0 : index
      %47 = vector.load %arg7[%c0_32, %c0_33] : memref<32x32xbf16, #tpu.memory_space<vmem>>, vector<32x32xbf16>
      %c8_i32_34 = arith.constant 8 : i32
      %48 = vector.broadcast %c8_i32_34 : i32 to vector<32x1xi32>
      %49 = arith.cmpi slt, %46, %48 : vector<32x1xi32>
      %cst_35 = arith.constant 0.000000e+00 : bf16
      %50 = vector.broadcast %cst_35 : bf16 to vector<32x32xbf16>
      %51 = vector.shape_cast %49 : vector<32x1xi1> to vector<32x1xi1>
      %52 = vector.broadcast %51 : vector<32x1xi1> to vector<32x32xi1>
      %53 = arith.select %52, %47, %50 : vector<32x32xi1>, vector<32x32xbf16>
      %c0_36 = arith.constant 0 : index
      %c0_37 = arith.constant 0 : index
      %54 = vector.load %arg7[%c0_36, %c0_37] : memref<32x32xbf16, #tpu.memory_space<vmem>>, vector<32x32xbf16>
      tpu.vector_store %arg7[%c0_36, %c0_37], %53 {strides = array<i32>} : memref<32x32xbf16, #tpu.memory_space<vmem>>, vector<32x32xbf16>,
    } else {
    }
    %c0_15 = arith.constant 0 : index
    %c0_16 = arith.constant 0 : index
    %18 = vector.load %arg7[%c0_15, %c0_16] : memref<32x32xbf16, #tpu.memory_space<vmem>>, vector<32x32xbf16>
    %c0_17 = arith.constant 0 : index
    %c0_18 = arith.constant 0 : index
    %c0_19 = arith.constant 0 : index
    %19 = vector.load %arg5[%c0_17, %c0_18, %c0_19] : memref<4x32x128xbf16, #tpu.memory_space<vmem>>, vector<1x32x128xbf16>
    %20 = vector.shape_cast %19 : vector<1x32x128xbf16> to vector<32x128xbf16>
    %cst = arith.constant dense<0.000000e+00> : vector<32x128xf32>
    %21 = tpu.matmul %18, %20, %cst {dimension_numbers = #tpu.dot_dimension_numbers<[1], [0], [0], [1], [0, 0, 1, 1], [], []>} : vector<32x32xbf16>, vector<32x128xbf16>, vector<32x128xf32> -> vector<32x128xf32>
    %c26_i32 = arith.constant 26 : i32
    %22 = tpu.dynamic_rotate %21 by %c26_i32 dim 0 : vector<32x128xf32>, i32 -> vector<32x128xf32>
    %23 = vector.extract_strided_slice %22 {offsets = [0, 0], sizes = [16, 128], strides = [1, 1]} : vector<32x128xf32> to vector<16x128xf32>
    %c1 = arith.constant 1 : index
    %c0_20 = arith.constant 0 : index
    %c0_21 = arith.constant 0 : index
    %24 = vector.load %arg5[%c1, %c0_20, %c0_21] : memref<4x32x128xbf16, #tpu.memory_space<vmem>>, vector<1x32x128xbf16>
    %25 = vector.shape_cast %24 : vector<1x32x128xbf16> to vector<32x128xbf16>
    %cst_22 = arith.constant dense<0.000000e+00> : vector<32x128xf32>
    %26 = tpu.matmul %18, %25, %cst_22 {dimension_numbers = #tpu.dot_dimension_numbers<[1], [0], [0], [1], [0, 0, 1, 1], [], []>} : vector<32x32xbf16>, vector<32x128xbf16>, vector<32x128xf32> -> vector<32x128xf32>
    %c25_i32 = arith.constant 25 : i32
    %27 = tpu.dynamic_rotate %26 by %c25_i32 dim 0 : vector<32x128xf32>, i32 -> vector<32x128xf32>
    %28 = vector.extract_strided_slice %27 {offsets = [0, 0], sizes = [16, 128], strides = [1, 1]} : vector<32x128xf32> to vector<16x128xf32>
    %29 = arith.addf %23, %28 : vector<16x128xf32>
    %c2 = arith.constant 2 : index
    %c0_23 = arith.constant 0 : index
    %c0_24 = arith.constant 0 : index
    %30 = vector.load %arg5[%c2, %c0_23, %c0_24] : memref<4x32x128xbf16, #tpu.memory_space<vmem>>, vector<1x32x128xbf16>
    %31 = vector.shape_cast %30 : vector<1x32x128xbf16> to vector<32x128xbf16>
    %cst_25 = arith.constant dense<0.000000e+00> : vector<32x128xf32>
    %32 = tpu.matmul %18, %31, %cst_25 {dimension_numbers = #tpu.dot_dimension_numbers<[1], [0], [0], [1], [0, 0, 1, 1], [], []>} : vector<32x32xbf16>, vector<32x128xbf16>, vector<32x128xf32> -> vector<32x128xf32>
    %33 = vector.extract_strided_slice %32 {offsets = [8, 0], sizes = [16, 128], strides = [1, 1]} : vector<32x128xf32> to vector<16x128xf32>
    %34 = arith.addf %29, %33 : vector<16x128xf32>
    %c3 = arith.constant 3 : index
    %c0_26 = arith.constant 0 : index
    %c0_27 = arith.constant 0 : index
    %35 = vector.load %arg5[%c3, %c0_26, %c0_27] : memref<4x32x128xbf16, #tpu.memory_space<vmem>>, vector<1x32x128xbf16>
    %36 = vector.shape_cast %35 : vector<1x32x128xbf16> to vector<32x128xbf16>
    %cst_28 = arith.constant dense<0.000000e+00> : vector<32x128xf32>
    %37 = tpu.matmul %18, %36, %cst_28 {dimension_numbers = #tpu.dot_dimension_numbers<[1], [0], [0], [1], [0, 0, 1, 1], [], []>} : vector<32x32xbf16>, vector<32x128xbf16>, vector<32x128xf32> -> vector<32x128xf32>
    %c23_i32 = arith.constant 23 : i32
    %38 = tpu.dynamic_rotate %37 by %c23_i32 dim 0 : vector<32x128xf32>, i32 -> vector<32x128xf32>
    %39 = vector.extract_strided_slice %38 {offsets = [0, 0], sizes = [16, 128], strides = [1, 1]} : vector<32x128xf32> to vector<16x128xf32>
    %40 = arith.addf %34, %39 : vector<16x128xf32>
    %c0_29 = arith.constant 0 : index
    %c0_30 = arith.constant 0 : index
    %c0_31 = arith.constant 0 : index
    %41 = vector.load %arg6[%c0_29, %c0_30, %c0_31] : memref<1x16x128xf32, #tpu.memory_space<vmem>>, vector<1x16x128xf32>
    %42 = vector.shape_cast %41 : vector<1x16x128xf32> to vector<16x128xf32>
    %43 = vector.shape_cast %40 : vector<16x128xf32> to vector<1x16x128xf32>
    tpu.vector_store %arg6[%c0_29, %c0_30, %c0_31], %43 {strides = array<i32>} : memref<1x16x128xf32, #tpu.memory_space<vmem>>, vector<1x16x128xf32>,
    return
  }
  func.func @transform_0(%arg0: i32, %arg1: i32) -> (i32, i32, i32) {
    %c2_i32 = arith.constant 2 : i32
    %0 = arith.muli %arg1, %c2_i32 : i32
    %c1_i32 = arith.constant 1 : i32
    %1 = arith.subi %0, %c1_i32 : i32
    %c0_i32 = arith.constant 0 : i32
    %2 = arith.maxsi %1, %c0_i32 : i32
    %c0_i32_0 = arith.constant 0 : i32
    %c0_i32_1 = arith.constant 0 : i32
    return %arg0, %2, %c0_i32_0 : i32, i32, i32
  }
  func.func @transform_1(%arg0: i32, %arg1: i32) -> (i32, i32, i32) {
    %c0_i32 = arith.constant 0 : i32
    %0 = arith.minsi %arg1, %c0_i32 : i32
    %c0_i32_0 = arith.constant 0 : i32
    %c0_i32_1 = arith.constant 0 : i32
    return %arg0, %0, %c0_i32_0 : i32, i32, i32
  }
  func.func @transform_2(%arg0: i32, %arg1: i32) -> (i32, i32, i32) {
    %c1_i32 = arith.constant 1 : i32
    %0 = arith.addi %arg1, %c1_i32 : i32
    %c2_i32 = arith.constant 2 : i32
    %1 = arith.muli %0, %c2_i32 : i32
    %c0_i32 = arith.constant 0 : i32
    %2 = arith.minsi %1, %c0_i32 : i32
    %c0_i32_0 = arith.constant 0 : i32
    %c0_i32_1 = arith.constant 0 : i32
    return %arg0, %2, %c0_i32_0 : i32, i32, i32
  }
  func.func @transform_3(%arg0: i32, %arg1: i32) -> (i32, i32, i32) {
    %c0_i32 = arith.constant 0 : i32
    %c0_i32_0 = arith.constant 0 : i32
    %c0_i32_1 = arith.constant 0 : i32
    %c0_i32_2 = arith.constant 0 : i32
    return %c0_i32, %c0_i32_0, %c0_i32_1 : i32, i32, i32
  }
  func.func @transform_4(%arg0: i32, %arg1: i32) -> (i32, i32, i32) {
    %c0_i32 = arith.constant 0 : i32
    %c0_i32_0 = arith.constant 0 : i32
    return %arg0, %arg1, %c0_i32 : i32, i32, i32
  }
}

</mosaic_0001>

<llo_original>
// kernel: tpu_custom_call.1
$region0: #{tpu_custom_call.1}
  #allocation0 [shape = 'u32[]', space=smem, size = 0x4, offset = 0x4, fixed_abs, tag = 'smem constant byte address 0x4 - core index']
  #allocation1 [shape = 'u32[144,128]{1,0:T(1,128)}', space=vmem, size = 0x12000, scoped, tag = 'internal scratch']
  #allocation2 [shape = 'bf16[32,32]{1,0:T(16,128)(2,1)}', space=vmem, size = 0x2000, scoped, tag = 'scratch operand']
  %s0 = inlined_call_operand.hbm [shape: bf16[2,8,32], index: 0, kind: input, shape index: {}]
  %s1 = inlined_call_operand.hbm [shape: bf16[2,8,32], index: 1, kind: input, shape index: {}]
  %s2 = inlined_call_operand.hbm [shape: bf16[2,8,32], index: 2, kind: input, shape index: {}]
  %s3 = inlined_call_operand.hbm [shape: bf16[4,32,128], index: 3, kind: input, shape index: {}]
  %s4 = inlined_call_operand.hbm [shape: f32[2,16,128], index: 4, kind: output, shape index: {}]
  %s5 = sld [smem:[#allocation0]]
  $region73: #{tpu_custom_call.1} parent=0
    _
  %s7 = ssub.s32 1, %s5
  %s8 = scalar_select 0, %s7, %s5
  $region1: #{tpu_custom_call.1} parent=0
    #allocation3 [shape = 'u8[4096]{0}', space=vmem, size = 0x1000, scoped, tag = 'input window, operand 0']
    #allocation4 [shape = 's32[2]{0}', space=sflag, size = 0x8, scoped, tag = 'scoped memory for tpu_custom_call.1']
    #allocation5 [shape = 's32[2]{0}', space=sflag, size = 0x8, scoped, tag = 'scoped memory for tpu_custom_call.1']
    #allocation6 [shape = 'u8[8192]{0}', space=vmem, size = 0x2000, scoped, tag = 'input window, operand 1']
    #allocation7 [shape = 's32[2]{0}', space=sflag, size = 0x8, scoped, tag = 'scoped memory for tpu_custom_call.1']
    #allocation8 [shape = 'u8[4096]{0}', space=vmem, size = 0x1000, scoped, tag = 'input window, operand 2']
    #allocation9 [shape = 'u8[32768]{0}', space=vmem, size = 0x8000, scoped, tag = 'input window, operand 3, single buffered']
    #allocation10 [shape = 's32[1]{0}', space=sflag, size = 0x4, scoped, tag = 'scoped memory for tpu_custom_call.1']
    #allocation11 [shape = 'u8[16384]{0}', space=vmem, size = 0x4000, scoped, tag = 'output window, operand 0']
    %9 = vsyncpa [#allocation4], 0
    %s10 = scalar_lea.sflag [#allocation4], 1
    %11 = vsyncpa %s10, 0
    %12 = vsyncpa [#allocation7], 0
    %s13 = scalar_lea.sflag [#allocation7], 1
    %14 = vsyncpa %s13, 0
    %15 = vsyncpa [#allocation10], 0
    %16 = vsyncpa [#allocation5], 0
    %s17 = scalar_lea.sflag [#allocation5], 1
    %18 = vsyncpa %s17, 0
    loop: start=0, step=1, limit=4
    $region2: #{tpu_custom_call.1} parent=1 // loop_pre_header
      _
    $region3: #{tpu_custom_call.1} parent=1 // loop_header
      %s20 = sphi 0, %s24
      %p21 = scmp.ge.s32.totalorder %s20, 4
      %s27 = sphi 0, %s39
      %s28 = sphi 0, %s35
      %s29 = sphi 0, %s27
      %s30 = sphi 0, %s28
      %s31 = sphi 0, %s29
      %s32 = sphi 0, %s30
      %s52 = sphi 0, %s54
      %s55 = sphi 0, %s52
      %s56 = sphi 0, %s55
      %s72 = sphi 0, %s56
      %s84 = sphi 0, %s86
      %s87 = sphi 0, %s84
      %s88 = sphi 0, %s87
      %s104 = sphi 0, %s88
      %s120 = sphi 0, %s122
      %s123 = sphi 0, %s120
      %s124 = sphi 0, %s123
      %s140 = sphi 0, %s124
      %s144 = sphi 0, %s144
      %s146 = sphi 0, %s144
      %s147 = sphi 0, %s146
      %s161 = sphi 0, %s147
      %s169 = sphi 0, %s171
      %s172 = sphi 0, %s169
      %s173 = sphi 0, %s172
      %s189 = sphi 0, %s173
    $region4: #{tpu_custom_call.1} parent=1 // loop_header_branch
      %23 = sbr.rel (%p21) target = $region8
    $region5: #{tpu_custom_call.1} parent=1 // loop_body
      %s25 = ssub.s32 %s20, 1
      %s26 = ssub.s32 %s20, 2
      %s33 = sadd.s32 1, %s28
      %p34 = scmp.ge.s32.totalorder %s33, 1
      %s35 = scalar_select %p34, 0, %s33
      %s36 = sadd.s32 1, %s27
      %s37 = scalar_select %p34, %s36, %s27
      %p38 = scmp.ge.s32.totalorder %s37, 2
      %s39 = scalar_select %p38, 0, %s37
      %s40 = smul.u32 %s28, 2
      %s41 = ssub.s32 %s40, 1
      %p42 = scmp.gt.s32.totalorder %s41, 0
      %s43 = scalar_select %p42, %s41, 0
      %s44 = smul.u32 %s35, 2
      %s45 = ssub.s32 %s44, 1
      %p46 = scmp.gt.s32.totalorder %s45, 0
      %s47 = scalar_select %p46, %s45, 0
      %s48 = ssub.s32 %s27, %s39
      %s49 = ssub.s32 %s43, %s47
      %s50 = sor.u32 %s48, %s49
      %p51 = scmp.eq.s32.totalorder %s50, 0
      %s53 = sadd.s32 %s52, 1
      %s54 = scalar_select %p51, %s52, %s53
      %p57 = pneg %p51
      %p58 = scmp.eq.s32.totalorder %s20, 1
      %p59 = por %p57, %p58
      %p60 = scmp.ne.s32.totalorder %s52, %s55
      %p61 = scmp.eq.s32.totalorder %s20, 0
      %p62 = por %p60, %p61
      %p63 = scmp.ne.s32.totalorder %s52, %s55
      %p64 = scmp.eq.s32.totalorder %s25, 1
      %p65 = por %p63, %p64
      %p66 = scmp.ne.s32.totalorder %s55, %s56
      %p67 = scmp.eq.s32.totalorder %s25, 0
      %p68 = por %p66, %p67
      %p69 = scmp.ne.s32.totalorder %s55, %s56
      %p70 = scmp.eq.s32.totalorder %s26, 1
      %p71 = por %p69, %p70
      %p73 = scmp.ne.s32.totalorder %s56, %s72
      %p74 = scmp.eq.s32.totalorder %s26, 0
      %p75 = por %p73, %p74
      %p76 = scmp.lt.s32.totalorder %s28, 0
      %s77 = scalar_select %p76, %s28, 0
      %p78 = scmp.lt.s32.totalorder %s35, 0
      %s79 = scalar_select %p78, %s35, 0
      %s80 = ssub.s32 %s27, %s39
      %s81 = ssub.s32 %s77, %s79
      %s82 = sor.u32 %s80, %s81
      %p83 = scmp.eq.s32.totalorder %s82, 0
      %s85 = sadd.s32 %s84, 1
      %s86 = scalar_select %p83, %s84, %s85
      %p89 = pneg %p83
      %p90 = scmp.eq.s32.totalorder %s20, 1
      %p91 = por %p89, %p90
      %p92 = scmp.ne.s32.totalorder %s84, %s87
      %p93 = scmp.eq.s32.totalorder %s20, 0
      %p94 = por %p92, %p93
      %p95 = scmp.ne.s32.totalorder %s84, %s87
      %p96 = scmp.eq.s32.totalorder %s25, 1
      %p97 = por %p95, %p96
      %p98 = scmp.ne.s32.totalorder %s87, %s88
      %p99 = scmp.eq.s32.totalorder %s25, 0
      %p100 = por %p98, %p99
      %p101 = scmp.ne.s32.totalorder %s87, %s88
      %p102 = scmp.eq.s32.totalorder %s26, 1
      %p103 = por %p101, %p102
      %p105 = scmp.ne.s32.totalorder %s88, %s104
      %p106 = scmp.eq.s32.totalorder %s26, 0
      %p107 = por %p105, %p106
      %s108 = sadd.s32 %s28, 1
      %s109 = smul.u32 %s108, 2
      %p110 = scmp.lt.s32.totalorder %s109, 0
      %s111 = scalar_select %p110, %s109, 0
      %s112 = sadd.s32 %s35, 1
      %s113 = smul.u32 %s112, 2
      %p114 = scmp.lt.s32.totalorder %s113, 0
      %s115 = scalar_select %p114, %s113, 0
      %s116 = ssub.s32 %s27, %s39
      %s117 = ssub.s32 %s111, %s115
      %s118 = sor.u32 %s116, %s117
      %p119 = scmp.eq.s32.totalorder %s118, 0
      %s121 = sadd.s32 %s120, 1
      %s122 = scalar_select %p119, %s120, %s121
      %p125 = pneg %p119
      %p126 = scmp.eq.s32.totalorder %s20, 1
      %p127 = por %p125, %p126
      %p128 = scmp.ne.s32.totalorder %s120, %s123
      %p129 = scmp.eq.s32.totalorder %s20, 0
      %p130 = por %p128, %p129
      %p131 = scmp.ne.s32.totalorder %s120, %s123
      %p132 = scmp.eq.s32.totalorder %s25, 1
      %p133 = por %p131, %p132
      %p134 = scmp.ne.s32.totalorder %s123, %s124
      %p135 = scmp.eq.s32.totalorder %s25, 0
      %p136 = por %p134, %p135
      %p137 = scmp.ne.s32.totalorder %s123, %s124
      %p138 = scmp.eq.s32.totalorder %s26, 1
      %p139 = por %p137, %p138
      %p141 = scmp.ne.s32.totalorder %s124, %s140
      %p142 = scmp.eq.s32.totalorder %s26, 0
      %p143 = por %p141, %p142
      %s145 = sadd.s32 %s144, 1
      %p148 = scmp.eq.s32.totalorder %s20, 1
      %p149 = scmp.ne.s32.totalorder %s144, %s146
      %p150 = scmp.eq.s32.totalorder %s20, 0
      %p151 = por %p149, %p150
      %p152 = scmp.ne.s32.totalorder %s144, %s146
      %p153 = scmp.eq.s32.totalorder %s25, 1
      %p154 = por %p152, %p153
      %p155 = scmp.ne.s32.totalorder %s146, %s147
      %p156 = scmp.eq.s32.totalorder %s25, 0
      %p157 = por %p155, %p156
      %p158 = scmp.ne.s32.totalorder %s146, %s147
      %p159 = scmp.eq.s32.totalorder %s26, 1
      %p160 = por %p158, %p159
      %p162 = scmp.ne.s32.totalorder %s147, %s161
      %p163 = scmp.eq.s32.totalorder %s26, 0
      %p164 = por %p162, %p163
      %s165 = ssub.s32 %s27, %s39
      %s166 = ssub.s32 %s28, %s35
      %s167 = sor.u32 %s165, %s166
      %p168 = scmp.eq.s32.totalorder %s167, 0
      %s170 = sadd.s32 %s169, 1
      %s171 = scalar_select %p168, %s169, %s170
      %p174 = pneg %p168
      %p175 = scmp.eq.s32.totalorder %s20, 1
      %p176 = por %p174, %p175
      %p177 = scmp.ne.s32.totalorder %s169, %s172
      %p178 = scmp.eq.s32.totalorder %s20, 0
      %p179 = por %p177, %p178
      %p180 = scmp.ne.s32.totalorder %s169, %s172
      %p181 = scmp.eq.s32.totalorder %s25, 1
      %p182 = por %p180, %p181
      %p183 = scmp.ne.s32.totalorder %s172, %s173
      %p184 = scmp.eq.s32.totalorder %s25, 0
      %p185 = por %p183, %p184
      %p186 = scmp.ne.s32.totalorder %s172, %s173
      %p187 = scmp.eq.s32.totalorder %s26, 1
      %p188 = por %p186, %p187
      %p190 = scmp.ne.s32.totalorder %s173, %s189
      %p191 = scmp.eq.s32.totalorder %s26, 0
      %p192 = por %p190, %p191
      %p193 = scmp.le.s32.totalorder 1, %s20
      %p194 = scmp.lt.s32.totalorder %s20, 3
      %p195 = pnand %p193, %p194
      %p196 = pneg %p195
      // Predicated region
      $region9: #{tpu_custom_call.1} parent=5 // pred_check
        _
      $region10: #{tpu_custom_call.1} parent=5 // pred_check_branch
        %198 = sbr.rel (%p195) target = $region12
      $region11: #{tpu_custom_call.1} parent=5 // pred_region
        %s199 = ssub.s32 %s20, 1
        // Predicated region
        $region13: #{tpu_custom_call.1} parent=11 // pred_check
          %p200 = pneg %p157
        $region14: #{tpu_custom_call.1} parent=11 // pred_check_branch
          %202 = sbr.rel (%p200) target = $region16
        $region15: #{tpu_custom_call.1} parent=11 // pred_region
          %s204 = ssub.s32 1024, 1024
          %205 = vsyncadd [#allocation10], %s204
          %s206 = sshll.u32 [#allocation9], 4
          %s207 = int_to_ptr.vmem [resolvable:$true] %s206
          %212 = dma.hbm_to_vmem [thread:$0]  %s3, 1024, %s207, [#allocation10], 64, 64, 4
        $region16: #{tpu_custom_call.1} parent=11 // pred_fallthru
          _
      $region12: #{tpu_custom_call.1} parent=5 // pred_fallthru
        _
      %p213 = scmp.lt.s32.totalorder %s20, 2
      // Predicated region
      $region17: #{tpu_custom_call.1} parent=5 // pred_check
        %p214 = pneg %p213
      $region18: #{tpu_custom_call.1} parent=5 // pred_check_branch
        %216 = sbr.rel (%p214) target = $region20
      $region19: #{tpu_custom_call.1} parent=5 // pred_region
        // Predicated region
        $region21: #{tpu_custom_call.1} parent=19 // pred_check
          %p217 = pneg %p62
        $region22: #{tpu_custom_call.1} parent=19 // pred_check_branch
          %219 = sbr.rel (%p217) target = $region24
        $region23: #{tpu_custom_call.1} parent=19 // pred_region
          %s220 = sand.u32 %s52, 1
          %s221 = scalar_lea.sflag [#allocation4], %s220
          %s222 = sand.u32 %s52, 1
          %s223 = smul.addr %s222, 4
          %s224 = scalar_lea.vmem [#allocation3], %s223
          %s225 = smul.u32 %s28, 2
          %s226 = ssub.s32 %s225, 1
          %p227 = scmp.gt.s32.totalorder %s226, 0
          %s228 = scalar_select %p227, %s226, 0
          %s230 = ssub.s32 64, 64
          %231 = vsyncadd %s221, %s230
          %s232 = sadd.s32 %s228, %s27
          %s233 = smul.addr %s232, 64
          %s234 = scalar_lea.hbm %s0, %s233
          %s236 = sshll.u32 %s224, 4
          %s237 = int_to_ptr.vmem [resolvable:$true] %s236
          %239 = dma.hbm_to_vmem [thread:$0]  %s234, 64, %s237, %s221
        $region24: #{tpu_custom_call.1} parent=19 // pred_fallthru
          _
        // Predicated region
        $region25: #{tpu_custom_call.1} parent=19 // pred_check
          %p240 = pneg %p94
        $region26: #{tpu_custom_call.1} parent=19 // pred_check_branch
          %242 = sbr.rel (%p240) target = $region28
        $region27: #{tpu_custom_call.1} parent=19 // pred_region
          %s243 = sand.u32 %s20, 1
          %s244 = scalar_lea.sflag [#allocation7], %s243
          %s245 = sand.u32 %s84, 1
          %s246 = smul.addr %s245, 8
          %s247 = scalar_lea.vmem [#allocation6], %s246
          %p248 = scmp.lt.s32.totalorder %s28, 0
          %s249 = scalar_select %p248, %s28, 0
          %s250 = smul.u32 2, %s249
          %s251 = ssub.s32 1, %s250
          %s252 = smul.u32 64, %s251
          %s254 = ssub.s32 128, %s252
          %255 = vsyncadd %s244, %s254
          %p256 = scmp.ne.s32.totalorder 0, %s252
          %s257 = sadd.s32 %s250, %s27
          %s258 = smul.addr %s257, 64
          %s259 = scalar_lea.hbm %s1, %s258
          %s260 = smul.u32 4, %s251
          %s261 = sshll.u32 %s247, 4
          %s262 = int_to_ptr.vmem [resolvable:$true] %s261
          %s263 = sshll.u32 %s260, 4
          %267 = dma.hbm_to_vmem [thread:$0]  (%p256), %s259, %s263, %s262, %s244, 64, 64, 4
        $region28: #{tpu_custom_call.1} parent=19 // pred_fallthru
          _
        // Predicated region
        $region29: #{tpu_custom_call.1} parent=19 // pred_check
          %p268 = pneg %p130
        $region30: #{tpu_custom_call.1} parent=19 // pred_check_branch
          %270 = sbr.rel (%p268) target = $region32
        $region31: #{tpu_custom_call.1} parent=19 // pred_region
          %s271 = sand.u32 %s20, 1
          %s272 = scalar_lea.sflag [#allocation7], %s271
          %s273 = sand.u32 %s120, 1
          %s274 = smul.addr %s273, 4
          %s275 = scalar_lea.vmem [#allocation8], %s274
          %s276 = sadd.s32 %s28, 1
          %s277 = smul.u32 %s276, 2
          %p278 = scmp.lt.s32.totalorder %s277, 0
          %s279 = scalar_select %p278, %s277, 0
          %s281 = ssub.s32 64, 64
          %282 = vsyncadd %s272, %s281
          %s283 = sadd.s32 %s279, %s27
          %s284 = smul.addr %s283, 64
          %s285 = scalar_lea.hbm %s2, %s284
          %s287 = sshll.u32 %s275, 4
          %s288 = int_to_ptr.vmem [resolvable:$true] %s287
          %290 = dma.hbm_to_vmem [thread:$0]  %s285, 64, %s288, %s272
        $region32: #{tpu_custom_call.1} parent=19 // pred_fallthru
          _
      $region20: #{tpu_custom_call.1} parent=5 // pred_fallthru
        _
      %p291 = scmp.le.s32.totalorder 1, %s20
      %p292 = scmp.lt.s32.totalorder %s20, 3
      %p293 = pnand %p291, %p292
      %p294 = pneg %p293
      // Predicated region
      $region33: #{tpu_custom_call.1} parent=5 // pred_check
        _
      $region34: #{tpu_custom_call.1} parent=5 // pred_check_branch
        %296 = sbr.rel (%p293) target = $region36
      $region35: #{tpu_custom_call.1} parent=5 // pred_region
        %s297 = ssub.s32 %s20, 1
        %s298 = sand.u32 %s55, 1
        %s299 = scalar_lea.sflag [#allocation4], %s298
        %s300 = sand.u32 %s55, 1
        %s301 = smul.addr %s300, 4
        %s302 = scalar_lea.vmem [#allocation3], %s301
        // Predicated region
        $region37: #{tpu_custom_call.1} parent=35 // pred_check
          %p303 = pneg %p68
        $region38: #{tpu_custom_call.1} parent=35 // pred_check_branch
          %305 = sbr.rel (%p303) target = $region40
        $region39: #{tpu_custom_call.1} parent=35 // pred_region
          %306 = dma.done %s299, 64
        $region40: #{tpu_custom_call.1} parent=35 // pred_fallthru
          _
        %s307 = sand.u32 %s25, 1
        %s308 = scalar_lea.sflag [#allocation7], %s307
        %s309 = sand.u32 %s87, 1
        %s310 = smul.addr %s309, 8
        %s311 = scalar_lea.vmem [#allocation6], %s310
        // Predicated region
        $region41: #{tpu_custom_call.1} parent=35 // pred_check
          %p312 = pneg %p100
        $region42: #{tpu_custom_call.1} parent=35 // pred_check_branch
          %314 = sbr.rel (%p312) target = $region44
        $region43: #{tpu_custom_call.1} parent=35 // pred_region
          %315 = dma.done %s308, 128
        $region44: #{tpu_custom_call.1} parent=35 // pred_fallthru
          _
        %s316 = sand.u32 %s25, 1
        %s317 = scalar_lea.sflag [#allocation7], %s316
        %s318 = sand.u32 %s123, 1
        %s319 = smul.addr %s318, 4
        %s320 = scalar_lea.vmem [#allocation8], %s319
        // Predicated region
        $region45: #{tpu_custom_call.1} parent=35 // pred_check
          %p321 = pneg %p136
        $region46: #{tpu_custom_call.1} parent=35 // pred_check_branch
          %323 = sbr.rel (%p321) target = $region48
        $region47: #{tpu_custom_call.1} parent=35 // pred_region
          %324 = dma.done %s317, 64
        $region48: #{tpu_custom_call.1} parent=35 // pred_fallthru
          _
        // Predicated region
        $region49: #{tpu_custom_call.1} parent=35 // pred_check
          %p325 = pneg %p157
        $region50: #{tpu_custom_call.1} parent=35 // pred_check_branch
          %327 = sbr.rel (%p325) target = $region52
        $region51: #{tpu_custom_call.1} parent=35 // pred_region
          %328 = dma.done [#allocation10], 1024
        $region52: #{tpu_custom_call.1} parent=35 // pred_fallthru
          _
        %s329 = sand.u32 %s55, 1
        %s330 = scalar_lea.sflag [#allocation4], %s329
        %s331 = sand.u32 %s55, 1
        %s332 = smul.addr %s331, 4
        %s333 = scalar_lea.vmem [#allocation3], %s332
        %p334 = pneg %p68
        %p335 = pneg %p65
        %s336 = sand.u32 %s25, 1
        %s337 = scalar_lea.sflag [#allocation7], %s336
        %s338 = sand.u32 %s87, 1
        %s339 = smul.addr %s338, 8
        %s340 = scalar_lea.vmem [#allocation6], %s339
        %p341 = pneg %p100
        %p342 = pneg %p97
        %s343 = sand.u32 %s25, 1
        %s344 = scalar_lea.sflag [#allocation7], %s343
        %s345 = sand.u32 %s123, 1
        %s346 = smul.addr %s345, 4
        %s347 = scalar_lea.vmem [#allocation8], %s346
        %p348 = pneg %p136
        %p349 = pneg %p133
        %p350 = pneg %p157
        %p351 = pneg %p154
        %p352 = pneg %p185
        %p353 = pneg %p182
        %s354 = sand.u32 %s172, 1
        %s355 = scalar_lea.sflag [#allocation5], %s354
        %s356 = sand.u32 %s172, 1
        %s357 = smul.addr %s356, 16
        %s358 = scalar_lea.vmem [#allocation11], %s357
        %s359 = smul.u32 %s30, 2
        %s360 = ssub.s32 %s359, 1
        %p361 = scmp.gt.s32.totalorder %s360, 0
        %s362 = scalar_select %p361, %s360, 0
        %p363 = scmp.lt.s32.totalorder %s30, 0
        %s364 = scalar_select %p363, %s30, 0
        %s365 = smul.u32 2, %s364
        %s366 = ssub.s32 1, %s365
        %s367 = smul.u32 64, %s366
        %s368 = sadd.s32 %s30, 1
        %s369 = smul.u32 %s368, 2
        %p370 = scmp.lt.s32.totalorder %s369, 0
        %s371 = scalar_select %p370, %s369, 0
        %s372 = smul.u32 2, %s30
        %s376 = smul.u32 %s30, 16
        %s377 = ssub.s32 %s376, 8
        %v378 = vld [vmem:[%s302] sm:$0xf]
        %vm379 = vcmask 257024
        %380 = vst.msk [vmem:[#allocation2] sm:$0xf] %vm379, %v378
        %v381 = vld [vmem:[%s311] sm:$0xf]
        %v382 = vld [vmem:[%s311 + $0x4] sm:$0xf]
        %v385 = vunpack.c.l.b16 %v381
        %v386 = vunpack.c.l.b16 %v382
        %v387 = vpack.c.b16 %v385, %v385
        %v388 = vpack.c.b16 %v386, %v386
        %vm391 = vcmask 261124
        %392 = vst.msk [vmem:[#allocation2] sm:$0xf0] %vm391, %v387
        %393 = vst.msk [vmem:[#allocation2 + $0x8] sm:$0xf] %vm379, %v388
        %v394 = vld [vmem:[%s320] sm:$0xf]
        %v396 = vunpack.c.l.b16 %v394
        %v397 = vpack.c.b16 %v396, %v396
        %399 = vst.msk [vmem:[#allocation2 + $0x8] sm:$0xf0] %vm391, %v397
        %p400 = scmp.eq.s32.totalorder %s30, 0
        // Predicated region
        $region53: #{tpu_custom_call.1} parent=35 // pred_check
          %p401 = pneg %p400
        $region54: #{tpu_custom_call.1} parent=35 // pred_check_branch
          %403 = sbr.rel (%p401) target = $region56
        $region55: #{tpu_custom_call.1} parent=35 // pred_region
          %404 = vst.msk [vmem:[#allocation2] sm:$0xf] %vm379, 0
        $region56: #{tpu_custom_call.1} parent=35 // pred_fallthru
          _
        %s405 = sadd.s32 %s376, 24
        %p406 = scmp.gt.s32.totalorder %s405, 8
        // Predicated region
        $region57: #{tpu_custom_call.1} parent=35 // pred_check
          %p407 = pneg %p406
        $region58: #{tpu_custom_call.1} parent=35 // pred_check_branch
          %409 = sbr.rel (%p407) target = $region60
        $region59: #{tpu_custom_call.1} parent=35 // pred_region
          %v410 = vlaneseq
          %v411 = vshrl.u32 %v410, 7
          %v412 = vadd.s32 %v411, 8
          %v413 = vadd.s32 %v411, 16
          %v414 = vadd.s32 %v411, 24
          %v415 = vstv %s377
          %v416 = vadd.s32 %v415, %v411
          %v417 = vadd.s32 %v415, %v412
          %v418 = vadd.s32 %v415, %v413
          %v419 = vadd.s32 %v415, %v414
          %v420 = vld [vmem:[#allocation2] sm:$0xff]
          %v421 = vld [vmem:[#allocation2 + $0x8] sm:$0xff]
          %vm422 = vcmp.lt.s32.totalorder %v416, 8
          %vm423 = vcmp.lt.s32.totalorder %v417, 8
          %vm424 = vcmp.lt.s32.totalorder %v418, 8
          %vm425 = vcmp.lt.s32.totalorder %v419, 8
          %v426 = vsel %vm422, 1, 0
          %v427 = vsel %vm423, 1, 0
          %v428 = vsel %vm424, 1, 0
          %v429 = vsel %vm425, 1, 0
          %vm430 = vcmp.eq.s32.totalorder %v426, 1
          %vm431 = vcmp.eq.s32.totalorder %v427, 1
          %vm432 = vcmp.eq.s32.totalorder %v428, 1
          %vm433 = vcmp.eq.s32.totalorder %v429, 1
          %vm434 = vmpackc.low %vm430, %vm430
          %vm435 = vmpackc.low %vm431, %vm431
          %vm436 = vmpackc.low %vm432, %vm432
          %vm437 = vmpackc.low %vm433, %vm433
          %v438 = vsel %vm434, 65537, 0
          %v439 = vsel %vm435, 65537, 0
          %v440 = vsel %vm436, 65537, 0
          %v441 = vsel %vm437, 65537, 0
          %v442 = vunpack.c.l.b16 %v438
          %v443 = vunpack.c.l.b16 %v439
          %v444 = vunpack.c.l.b16 %v440
          %v445 = vunpack.c.l.b16 %v441
          %v446 = vpack.c.b16 %v443, %v442
          %v447 = vpack.c.b16 %v445, %v444
          %vm448 = vcmp.ne.s16.totalorder %v446, 0
          %vm449 = vcmp.ne.s16.totalorder %v447, 0
          %v450 = vsel %vm448, %v420, 0
          %v451 = vsel %vm449, %v421, 0
          %vm452 = vcmask 261120
          %453 = vst.msk [vmem:[#allocation2] sm:$0xff] %vm452, %v450
          %454 = vst.msk [vmem:[#allocation2 + $0x8] sm:$0xff] %vm452, %v451
        $region60: #{tpu_custom_call.1} parent=35 // pred_fallthru
          _
        %v455 = vld [vmem:[#allocation2] sm:$0xff]
        %v456 = vld [vmem:[#allocation2 + $0x8] sm:$0xff]
        %v457 = vld [vmem:[#allocation9] sm:$0xf]
        %v458 = vld [vmem:[#allocation9 + $0x4] sm:$0xf]
        %v459 = vld [vmem:[#allocation9 + $0x8] sm:$0xf]
        %v460 = vld [vmem:[#allocation9 + $0xc] sm:$0xf]
        %v465 = vunpack.c.l.b16 %v457
        %v466 = vunpack.c.l.b16 %v458
        %v467 = vunpack.c.l.b16 %v459
        %v468 = vunpack.c.l.b16 %v460
        %v469 = vpack.c.b16 %v466, %v465
        %v470 = vpack.c.b16 %v468, %v467
        %vm473 = vcmask 261120
        %v475 = vsel %vm473, %v455, 0
        %v478 = vsel %vm473, %v456, 0
        %480 = vmatprep.subr.bf16.mxu0 0
        %481 = vmatpush1.bf16.msra.mxu0 %v469
        %482 = vmatprep.subr.bf16.mxu0 0
        %483 = vmatpush1.bf16.msra.mxu0 %v470
        %484 = vmatprep.subr.bf16.mxu0 0
        %485 = vmatpush1.bf16.msra.mxu0 0
        %486 = vmatprep.subr.bf16.mxu0 0
        %487 = vmatpush1.bf16.msra.mxu0 0
        %488 = vmatprep.subr.bf16.mxu0 0
        %489 = vmatpush1.bf16.msra.mxu0 0
        %490 = vmatprep.subr.bf16.mxu0 0
        %491 = vmatpush1.bf16.msra.mxu0 0
        %492 = vmatprep.subr.bf16.mxu0 0
        %493 = vmatpush1.bf16.msra.mxu0 0
        %494 = vmatprep.subr.bf16.mxu0 0
        %495 = vmatpush1.bf16.msra.mxu0 0
        %496 = vmatprep.subr.bf16.mxu0 0
        %497 = vmatpush1.bf16.msra.mxu0 0
        %498 = vmatprep.subr.bf16.mxu0 0
        %499 = vmatpush1.bf16.msra.mxu0 0
        %500 = vmatprep.subr.bf16.mxu0 0
        %501 = vmatpush1.bf16.msra.mxu0 0
        %502 = vmatprep.subr.bf16.mxu0 0
        %503 = vmatpush1.bf16.msra.mxu0 0
        %504 = vmatprep.subr.bf16.mxu0 0
        %505 = vmatpush1.bf16.msra.mxu0 0
        %506 = vmatprep.subr.bf16.mxu0 0
        %507 = vmatpush1.bf16.msra.mxu0 0
        %508 = vmatprep.subr.bf16.mxu0 0
        %509 = vmatpush1.bf16.msra.mxu0 0
        %510 = vmatprep.subr.bf16.mxu0 0
        %511 = vmatpush1.bf16.msra.mxu0 0
        %512 = vmatprep.mubr.bf16.mxu0 0
        %513 = vmatmul.mubr.bf16.gmra.mrb[0].mxu0 %v475
        %v514 = vpop.f32.mrb[0].mxu0
        %v515 = vadd.f32 0.0, %v514
        %v516 = vpop.f32.mrb[0].mxu0
        %v517 = vpop.f32.mrb[0].mxu0
        %v518 = vadd.f32 0.0, %v517
        %v519 = vpop.f32.mrb[0].mxu0
        %520 = vmatprep.mubr.bf16.mxu0 0
        %521 = vmatmul.mubr.bf16.gmra.mrb[0].mxu0 %v478
        %v522 = vpop.f32.mrb[0].mxu0
        %v523 = vadd.f32 0.0, %v522
        %v524 = vpop.f32.mrb[0].mxu0
        %v525 = vpop.f32.mrb[0].mxu0
        %v526 = vpop.f32.mrb[0].mxu0
        %527 = vdwg.mxu0
        %v528 = vrot.slane %v515, 6
        %v529 = vrot.slane %v518, 6
        %v530 = vrot.slane %v523, 6
        %v531 = vlaneseq
        %v532 = vshrl.u32 %v531, 7
        %vm533 = vcmp.lt.s32.totalorder %v532, 2
        %v534 = vsel %vm533, %v529, %v530
        %v535 = vsel %vm533, %v528, %v529
        %s536 = scalar_lea.vmem [#allocation9], 16
        %v537 = vld [vmem:[%s536] sm:$0xf]
        %v538 = vld [vmem:[%s536 + $0x4] sm:$0xf]
        %v539 = vld [vmem:[%s536 + $0x8] sm:$0xf]
        %v540 = vld [vmem:[%s536 + $0xc] sm:$0xf]
        %v545 = vunpack.c.l.b16 %v537
        %v546 = vunpack.c.l.b16 %v538
        %v547 = vunpack.c.l.b16 %v539
        %v548 = vunpack.c.l.b16 %v540
        %v549 = vpack.c.b16 %v546, %v545
        %v550 = vpack.c.b16 %v548, %v547
        %553 = vmatprep.subr.bf16.mxu0 0
        %554 = vmatpush1.bf16.msra.mxu0 %v549
        %555 = vmatprep.subr.bf16.mxu0 0
        %556 = vmatpush1.bf16.msra.mxu0 %v550
        %557 = vmatprep.subr.bf16.mxu0 0
        %558 = vmatpush1.bf16.msra.mxu0 0
        %559 = vmatprep.subr.bf16.mxu0 0
        %560 = vmatpush1.bf16.msra.mxu0 0
        %561 = vmatprep.subr.bf16.mxu0 0
        %562 = vmatpush1.bf16.msra.mxu0 0
        %563 = vmatprep.subr.bf16.mxu0 0
        %564 = vmatpush1.bf16.msra.mxu0 0
        %565 = vmatprep.subr.bf16.mxu0 0
        %566 = vmatpush1.bf16.msra.mxu0 0
        %567 = vmatprep.subr.bf16.mxu0 0
        %568 = vmatpush1.bf16.msra.mxu0 0
        %569 = vmatprep.subr.bf16.mxu0 0
        %570 = vmatpush1.bf16.msra.mxu0 0
        %571 = vmatprep.subr.bf16.mxu0 0
        %572 = vmatpush1.bf16.msra.mxu0 0
        %573 = vmatprep.subr.bf16.mxu0 0
        %574 = vmatpush1.bf16.msra.mxu0 0
        %575 = vmatprep.subr.bf16.mxu0 0
        %576 = vmatpush1.bf16.msra.mxu0 0
        %577 = vmatprep.subr.bf16.mxu0 0
        %578 = vmatpush1.bf16.msra.mxu0 0
        %579 = vmatprep.subr.bf16.mxu0 0
        %580 = vmatpush1.bf16.msra.mxu0 0
        %581 = vmatprep.subr.bf16.mxu0 0
        %582 = vmatpush1.bf16.msra.mxu0 0
        %583 = vmatprep.subr.bf16.mxu0 0
        %584 = vmatpush1.bf16.msra.mxu0 0
        %585 = vmatprep.mubr.bf16.mxu0 0
        %586 = vmatmul.mubr.bf16.gmra.mrb[0].mxu0 %v475
        %v587 = vpop.f32.mrb[0].mxu0
        %v588 = vadd.f32 0.0, %v587
        %v589 = vpop.f32.mrb[0].mxu0
        %v590 = vpop.f32.mrb[0].mxu0
        %v591 = vadd.f32 0.0, %v590
        %v592 = vpop.f32.mrb[0].mxu0
        %593 = vmatprep.mubr.bf16.mxu0 0
        %594 = vmatmul.mubr.bf16.gmra.mrb[0].mxu0 %v478
        %v595 = vpop.f32.mrb[0].mxu0
        %v596 = vadd.f32 0.0, %v595
        %v597 = vpop.f32.mrb[0].mxu0
        %v598 = vpop.f32.mrb[0].mxu0
        %v599 = vpop.f32.mrb[0].mxu0
        %600 = vdwg.mxu0
        %v601 = vrot.slane %v588, 7
        %v602 = vrot.slane %v591, 7
        %v603 = vrot.slane %v596, 7
        %vm604 = vcmp.lt.s32.totalorder %v532, 1
        %v605 = vsel %vm604, %v602, %v603
        %v606 = vsel %vm604, %v601, %v602
        %v607 = vadd.f32 %v535, %v606
        %v608 = vadd.f32 %v534, %v605
        %s609 = scalar_lea.vmem [#allocation9], 32
        %v610 = vld [vmem:[%s609] sm:$0xf]
        %v611 = vld [vmem:[%s609 + $0x4] sm:$0xf]
        %v612 = vld [vmem:[%s609 + $0x8] sm:$0xf]
        %v613 = vld [vmem:[%s609 + $0xc] sm:$0xf]
        %v618 = vunpack.c.l.b16 %v610
        %v619 = vunpack.c.l.b16 %v611
        %v620 = vunpack.c.l.b16 %v612
        %v621 = vunpack.c.l.b16 %v613
        %v622 = vpack.c.b16 %v619, %v618
        %v623 = vpack.c.b16 %v621, %v620
        %626 = vmatprep.subr.bf16.mxu0 0
        %627 = vmatpush1.bf16.msra.mxu0 %v622
        %628 = vmatprep.subr.bf16.mxu0 0
        %629 = vmatpush1.bf16.msra.mxu0 %v623
        %630 = vmatprep.subr.bf16.mxu0 0
        %631 = vmatpush1.bf16.msra.mxu0 0
        %632 = vmatprep.subr.bf16.mxu0 0
        %633 = vmatpush1.bf16.msra.mxu0 0
        %634 = vmatprep.subr.bf16.mxu0 0
        %635 = vmatpush1.bf16.msra.mxu0 0
        %636 = vmatprep.subr.bf16.mxu0 0
        %637 = vmatpush1.bf16.msra.mxu0 0
        %638 = vmatprep.subr.bf16.mxu0 0
        %639 = vmatpush1.bf16.msra.mxu0 0
        %640 = vmatprep.subr.bf16.mxu0 0
        %641 = vmatpush1.bf16.msra.mxu0 0
        %642 = vmatprep.subr.bf16.mxu0 0
        %643 = vmatpush1.bf16.msra.mxu0 0
        %644 = vmatprep.subr.bf16.mxu0 0
        %645 = vmatpush1.bf16.msra.mxu0 0
        %646 = vmatprep.subr.bf16.mxu0 0
        %647 = vmatpush1.bf16.msra.mxu0 0
        %648 = vmatprep.subr.bf16.mxu0 0
        %649 = vmatpush1.bf16.msra.mxu0 0
        %650 = vmatprep.subr.bf16.mxu0 0
        %651 = vmatpush1.bf16.msra.mxu0 0
        %652 = vmatprep.subr.bf16.mxu0 0
        %653 = vmatpush1.bf16.msra.mxu0 0
        %654 = vmatprep.subr.bf16.mxu0 0
        %655 = vmatpush1.bf16.msra.mxu0 0
        %656 = vmatprep.subr.bf16.mxu0 0
        %657 = vmatpush1.bf16.msra.mxu0 0
        %658 = vmatprep.mubr.bf16.mxu0 0
        %659 = vmatmul.mubr.bf16.gmra.mrb[0].mxu0 %v475
        %v660 = vpop.f32.mrb[0].mxu0
        %v661 = vpop.f32.mrb[0].mxu0
        %v662 = vpop.f32.mrb[0].mxu0
        %v663 = vadd.f32 0.0, %v662
        %v664 = vpop.f32.mrb[0].mxu0
        %665 = vmatprep.mubr.bf16.mxu0 0
        %666 = vmatmul.mubr.bf16.gmra.mrb[0].mxu0 %v478
        %v667 = vpop.f32.mrb[0].mxu0
        %v668 = vadd.f32 0.0, %v667
        %v669 = vpop.f32.mrb[0].mxu0
        %v670 = vpop.f32.mrb[0].mxu0
        %v671 = vpop.f32.mrb[0].mxu0
        %672 = vdwg.mxu0
        %v673 = vadd.f32 %v607, %v663
        %v674 = vadd.f32 %v608, %v668
        %s675 = scalar_lea.vmem [#allocation9], 48
        %v676 = vld [vmem:[%s675] sm:$0xf]
        %v677 = vld [vmem:[%s675 + $0x4] sm:$0xf]
        %v678 = vld [vmem:[%s675 + $0x8] sm:$0xf]
        %v679 = vld [vmem:[%s675 + $0xc] sm:$0xf]
        %v684 = vunpack.c.l.b16 %v676
        %v685 = vunpack.c.l.b16 %v677
        %v686 = vunpack.c.l.b16 %v678
        %v687 = vunpack.c.l.b16 %v679
        %v688 = vpack.c.b16 %v685, %v684
        %v689 = vpack.c.b16 %v687, %v686
        %692 = vmatprep.subr.bf16.mxu0 0
        %693 = vmatpush1.bf16.msra.mxu0 %v688
        %694 = vmatprep.subr.bf16.mxu0 0
        %695 = vmatpush1.bf16.msra.mxu0 %v689
        %696 = vmatprep.subr.bf16.mxu0 0
        %697 = vmatpush1.bf16.msra.mxu0 0
        %698 = vmatprep.subr.bf16.mxu0 0
        %699 = vmatpush1.bf16.msra.mxu0 0
        %700 = vmatprep.subr.bf16.mxu0 0
        %701 = vmatpush1.bf16.msra.mxu0 0
        %702 = vmatprep.subr.bf16.mxu0 0
        %703 = vmatpush1.bf16.msra.mxu0 0
        %704 = vmatprep.subr.bf16.mxu0 0
        %705 = vmatpush1.bf16.msra.mxu0 0
        %706 = vmatprep.subr.bf16.mxu0 0
        %707 = vmatpush1.bf16.msra.mxu0 0
        %708 = vmatprep.subr.bf16.mxu0 0
        %709 = vmatpush1.bf16.msra.mxu0 0
        %710 = vmatprep.subr.bf16.mxu0 0
        %711 = vmatpush1.bf16.msra.mxu0 0
        %712 = vmatprep.subr.bf16.mxu0 0
        %713 = vmatpush1.bf16.msra.mxu0 0
        %714 = vmatprep.subr.bf16.mxu0 0
        %715 = vmatpush1.bf16.msra.mxu0 0
        %716 = vmatprep.subr.bf16.mxu0 0
        %717 = vmatpush1.bf16.msra.mxu0 0
        %718 = vmatprep.subr.bf16.mxu0 0
        %719 = vmatpush1.bf16.msra.mxu0 0
        %720 = vmatprep.subr.bf16.mxu0 0
        %721 = vmatpush1.bf16.msra.mxu0 0
        %722 = vmatprep.subr.bf16.mxu0 0
        %723 = vmatpush1.bf16.msra.mxu0 0
        %724 = vmatprep.mubr.bf16.mxu0 0
        %725 = vmatmul.mubr.bf16.gmra.mrb[0].mxu0 %v475
        %v726 = vpop.f32.mrb[0].mxu0
        %v727 = vpop.f32.mrb[0].mxu0
        %v728 = vpop.f32.mrb[0].mxu0
        %v729 = vadd.f32 0.0, %v728
        %v730 = vpop.f32.mrb[0].mxu0
        %731 = vmatprep.mubr.bf16.mxu0 0
        %732 = vmatmul.mubr.bf16.gmra.mrb[0].mxu0 %v478
        %v733 = vpop.f32.mrb[0].mxu0
        %v734 = vadd.f32 0.0, %v733
        %v735 = vpop.f32.mrb[0].mxu0
        %v736 = vpop.f32.mrb[0].mxu0
        %v737 = vadd.f32 0.0, %v736
        %v738 = vpop.f32.mrb[0].mxu0
        %739 = vdwg.mxu0
        %v740 = vrot.slane %v729, 1
        %v741 = vrot.slane %v734, 1
        %v742 = vrot.slane %v737, 1
        %vm743 = vcmp.lt.s32.totalorder %v532, 7
        %v744 = vsel %vm743, %v741, %v742
        %v745 = vsel %vm743, %v740, %v741
        %v746 = vadd.f32 %v673, %v745
        %v747 = vadd.f32 %v674, %v744
        %748 = vst [vmem:[%s358] sm:$0xff] %v746
        %749 = vst [vmem:[%s358 + $0x8] sm:$0xff] %v747
        %s750 = sand.u32 %s172, 1
        %s751 = scalar_lea.sflag [#allocation5], %s750
        %s752 = sand.u32 %s172, 1
        %s753 = smul.addr %s752, 16
        %s754 = scalar_lea.vmem [#allocation11], %s753
        // Predicated region
        $region61: #{tpu_custom_call.1} parent=35 // pred_check
          %p755 = pneg %p182
        $region62: #{tpu_custom_call.1} parent=35 // pred_check_branch
          %757 = sbr.rel (%p755) target = $region64
        $region63: #{tpu_custom_call.1} parent=35 // pred_region
          %s758 = smul.u32 2, %s30
          %s760 = ssub.s32 256, 256
          %761 = vsyncadd %s751, %s760
          %s762 = smul.addr %s29, 2
          %s763 = sadd.s32 %s758, %s762
          %s764 = smul.addr %s763, 128
          %s765 = scalar_lea.hbm %s4, %s764
          %s766 = sshll.u32 %s754, 4
          %s767 = int_to_ptr.vmem [resolvable:$true] %s766
          %772 = dma.vmem_to_hbm [thread:$0]  %s767, 256, %s765, %s751, 128, 128, 8
        $region64: #{tpu_custom_call.1} parent=35 // pred_fallthru
          _
      $region36: #{tpu_custom_call.1} parent=5 // pred_fallthru
        _
      %p773 = scmp.le.s32.totalorder 2, %s20
      // Predicated region
      $region65: #{tpu_custom_call.1} parent=5 // pred_check
        %p774 = pneg %p773
      $region66: #{tpu_custom_call.1} parent=5 // pred_check_branch
        %776 = sbr.rel (%p774) target = $region68
      $region67: #{tpu_custom_call.1} parent=5 // pred_region
        %s777 = ssub.s32 %s20, 2
        // Predicated region
        $region69: #{tpu_custom_call.1} parent=67 // pred_check
          %p778 = pneg %p188
        $region70: #{tpu_custom_call.1} parent=67 // pred_check_branch
          %780 = sbr.rel (%p778) target = $region72
        $region71: #{tpu_custom_call.1} parent=67 // pred_region
          %s781 = sand.u32 %s173, 1
          %s782 = scalar_lea.sflag [#allocation5], %s781
          %s783 = sand.u32 %s173, 1
          %s784 = smul.addr %s783, 16
          %s785 = scalar_lea.vmem [#allocation11], %s784
          %786 = dma.done %s782, 256
        $region72: #{tpu_custom_call.1} parent=67 // pred_fallthru
          _
      $region68: #{tpu_custom_call.1} parent=5 // pred_fallthru
        _
    $region6: #{tpu_custom_call.1} parent=1 // loop_footer
      %s24 = sadd.s32 1, %s20
    $region7: #{tpu_custom_call.1} parent=1 // loop_footer_branch
      %19 = sbr.rel target = $region3
    $region8: #{tpu_custom_call.1} parent=1 // loop_exit
      _
    %787 = vsyncpa [#allocation4], 1
    %s788 = scalar_lea.sflag [#allocation4], 1
    %789 = vsyncpa %s788, 1
    %790 = vsyncpa [#allocation7], 1
    %s791 = scalar_lea.sflag [#allocation7], 1
    %792 = vsyncpa %s791, 1
    %793 = vsyncpa [#allocation10], 1
    %794 = vsyncpa [#allocation5], 1
    %s795 = scalar_lea.sflag [#allocation5], 1
    %796 = vsyncpa %s795, 1

</llo_original>
